<compile_context>
chip_gen: v7x
topology: tpu7x:2x2x1
jax: 0.10.0
libtpu: 0.0.40
codegen_flags: <defaults>
</compile_context>

<pallas_src>
import jax
import jax.numpy as jnp
from jax.experimental import pallas as pl
from jax.experimental.pallas import tpu as pltpu


def _conv1x1_bn_relu_kernel(x_ref, w_ref, b_ref, o_ref):
    # x_ref: (Nb, Cin, T)  w_ref: (Cout, Cin)  b_ref: (Cout, 1)  o_ref: (Nb, Cout, T)
    w = w_ref[...]
    b = b_ref[...]
    if w.dtype != x_ref.dtype:
        ct = jnp.promote_types(w.dtype, x_ref.dtype)
    else:
        ct = x_ref.dtype
    w = w.astype(ct)
    for i in range(x_ref.shape[0]):           # Nb is small & static -> unrolled
        xi = x_ref[i].astype(ct)              # (Cin, T)
        y = jnp.dot(w, xi, preferred_element_type=jnp.float32)   # (Cout, T) on MXU
        o_ref[i] = jnp.maximum(y + b, 0.0).astype(o_ref.dtype)


def _round_down_128(v):
    return max(128, (v // 128) * 128)


def _pick_blocking(N, Cin, Cout, HW, x_item, out_item, w_item, max_hw_tile):
    """Pick (Nb, T) from the per-generation VMEM budget."""
    try:
        vmem_cap = pltpu.get_tpu_info().vmem_capacity_bytes
    except Exception:
        vmem_cap = 64 * 1024 * 1024          # conservative (v7x-sized) default
    vmem_budget = int(vmem_cap) * 3 // 4     # ~48 MiB on v7x, ~96 MiB on v5e/v6e

    # Batch several images per grid step when the spatial map is small, so each
    # step moves enough bytes to amortize per-step overhead + short DMA bursts.
    if HW <= 1024:
        Nb = min(N, max(1, 4096 // max(HW, 1)))
        while N % Nb:
            Nb -= 1
    else:
        Nb = 1

    # TODO(synk): for very large channel counts (resident f32 weight > ~1/4 of
    # VMEM) add a Cin-reduction grid axis ("arbitrary") with an f32 accumulator
    # instead of keeping the whole folded weight resident.
    w_bytes = Cout * Cin * w_item + Cout * 4
    per_col = Nb * (Cin * x_item + Cout * out_item)   # bytes per spatial column / step
    t_budget = max(128, (vmem_budget - 2 * w_bytes) // max(2 * per_col, 1))
    t_budget = min(t_budget, max_hw_tile)
    if t_budget >= HW:
        T = HW                                # single full-width spatial block
    else:
        T = _round_down_128(t_budget)         # lane-dense multiple of 128

    # v7x has two TensorCores: keep >= 2 grid blocks when there is enough work.
    n_blocks = -(-N // Nb)
    hw_blocks = -(-HW // T)
    if n_blocks * hw_blocks < 2 and HW > 256:
        T = _round_down_128(-(-HW // 2))

    return Nb, T, vmem_budget, w_bytes


def basic_conv2d_1x1(x, conv_w, conv_b, bn_gamma, bn_beta, bn_mean, bn_var,
                     stride=1, padding=0, use_bn=True, eps=1e-5,
                     out_dtype=None, weight_dtype=None, max_hw_tile=8192):
    """x: (N, Cin, H, W) NCHW. Returns (N, Cout, Hout, Wout).

    out_dtype:    optional narrower store dtype (e.g. jnp.bfloat16) for v6e/v7x.
    weight_dtype: optional narrower dtype for the (tiny, resident) folded weight.
                  The activations are NOT cast in the wrapper (that would be a
                  separate full HBM pass); cast them upstream if desired.
    """
    if padding > 0:
        x = jnp.pad(x, ((0, 0), (0, 0), (padding, padding), (padding, padding)))
    if stride > 1:
        x = x[:, :, ::stride, ::stride]       # 1x1 kernel + stride == subsampling

    N, Cin, H, W = x.shape
    Cout = conv_w.shape[0]
    out_dtype = x.dtype if out_dtype is None else out_dtype

    # Fold BatchNorm (inference / running-stats semantics) into weight & bias, f32.
    # TODO(synk): training-mode BatchNorm (batch statistics) not implemented.
    w2d = conv_w.reshape(Cout, Cin).astype(jnp.float32)
    if use_bn:
        scale = bn_gamma.astype(jnp.float32) * jax.lax.rsqrt(
            bn_var.astype(jnp.float32) + eps)
        w2d = w2d * scale[:, None]
        bias = (conv_b.astype(jnp.float32) - bn_mean.astype(jnp.float32)) * scale \
            + bn_beta.astype(jnp.float32)
    else:
        bias = conv_b.astype(jnp.float32)
    if weight_dtype is not None:
        w2d = w2d.astype(weight_dtype)        # tiny + resident; never cast x here
    bias2d = bias.reshape(Cout, 1)

    # NCHW -> (N, Cin, HW): contiguous reshape, no transpose, no padding.
    HW = H * W
    x3d = x.reshape(N, Cin, HW)

    max_hw_tile = max(128, (int(max_hw_tile) // 128) * 128)
    out_item = jnp.dtype(out_dtype).itemsize
    Nb, T, vmem_budget, w_bytes = _pick_blocking(
        N, Cin, Cout, HW, x3d.dtype.itemsize, out_item,
        w2d.dtype.itemsize, max_hw_tile)

    grid = (pl.cdiv(N, Nb), pl.cdiv(HW, T))

    flops = 2 * N * HW * Cin * Cout
    bytes_accessed = int(x3d.dtype.itemsize * N * Cin * HW
                         + out_item * N * Cout * HW
                         + w2d.dtype.itemsize * Cin * Cout + 4 * Cout)
    tile_bytes = Nb * T * (Cin * x3d.dtype.itemsize + Cout * out_item)
    vmem_limit = int(min(vmem_budget,
                         max(2 * w_bytes + 2 * tile_bytes + (1 << 20), 16 << 20)))

    def call(single_buffer_resident):
        res_kw = ({"pipeline_mode": pl.Buffered(1)} if single_buffer_resident else {})
        return pl.pallas_call(
            _conv1x1_bn_relu_kernel,
            out_shape=jax.ShapeDtypeStruct((N, Cout, HW), out_dtype),
            grid=grid,
            in_specs=[
                pl.BlockSpec((Nb, Cin, T), lambda n, t: (n, 0, t)),        # activations
                pl.BlockSpec((Cout, Cin), lambda n, t: (0, 0), **res_kw),  # folded weight
                pl.BlockSpec((Cout, 1), lambda n, t: (0, 0), **res_kw),    # folded bias
            ],
            out_specs=pl.BlockSpec((Nb, Cout, T), lambda n, t: (n, 0, t)),
            compiler_params=pltpu.CompilerParams(
                dimension_semantics=("parallel", "parallel"),
                vmem_limit_bytes=vmem_limit),
            cost_estimate=pl.CostEstimate(flops=flops, transcendentals=0,
                                          bytes_accessed=bytes_accessed),
        )(x3d, w2d, bias2d)

    try:
        out3d = call(True)
    except Exception:
        # If this JAX build rejects pipeline_mode=Buffered(1) on TPU BlockSpecs,
        # fall back to the default (double-buffered resident weight/bias).
        out3d = call(False)

    return out3d.reshape(N, Cout, H, W)


if __name__ == "__main__":
    key = jax.random.PRNGKey(0)
    k_x, k_w, k_b, k_g, k_be, k_m, k_v = jax.random.split(key, 7)

    N, Cin, H, W = 2, 4, 16, 16
    Cout = 8

    x = jax.random.normal(k_x, (N, Cin, H, W), dtype=jnp.float32)
    conv_w = jax.random.normal(k_w, (Cout, Cin, 1, 1), dtype=jnp.float32) * 0.1
    conv_b = jax.random.normal(k_b, (Cout,), dtype=jnp.float32) * 0.1
    bn_gamma = jnp.ones((Cout,), jnp.float32) + 0.1 * jax.random.normal(k_g, (Cout,))
    bn_beta = 0.1 * jax.random.normal(k_be, (Cout,), dtype=jnp.float32)
    bn_mean = 0.1 * jax.random.normal(k_m, (Cout,), dtype=jnp.float32)
    bn_var = jnp.abs(jax.random.normal(k_v, (Cout,), dtype=jnp.float32)) + 0.5

    def reference(x_):
        scale = bn_gamma / jnp.sqrt(bn_var + 1e-5)
        y = jnp.einsum('nchw,oc->nohw', x_, conv_w.reshape(Cout, Cin))
        y = (y + conv_b[None, :, None, None] - bn_mean[None, :, None, None]) \
            * scale[None, :, None, None] + bn_beta[None, :, None, None]
        return jnp.maximum(y, 0.0)

    out = basic_conv2d_1x1(x, conv_w, conv_b, bn_gamma, bn_beta, bn_mean, bn_var,
                           stride=1, padding=0, use_bn=True)
    out = jax.block_until_ready(out)
    assert out.shape == (N, Cout, H, W)
    assert jnp.allclose(out, reference(x), atol=1e-4, rtol=1e-4)

    # Odd spatial size + forced small tile: exercises the masked boundary tile
    # (no wrapper pad/slice anymore) and the Nb>1 batched-block path.
    x_odd = jax.random.normal(k_x, (N, Cin, 17, 17), dtype=jnp.float32)
    out_odd = basic_conv2d_1x1(x_odd, conv_w, conv_b, bn_gamma, bn_beta,
                               bn_mean, bn_var, max_hw_tile=128)
    out_odd = jax.block_until_ready(out_odd)
    assert out_odd.shape == (N, Cout, 17, 17)
    assert jnp.allclose(out_odd, reference(x_odd), atol=1e-4, rtol=1e-4)

    print("KERNEL_OK")
</pallas_src>

<mosaic_0001>
module attributes {stable_mosaic.version = 11 : i64} {
  func.func @_conv1x1_bn_relu_kernel(%arg0: i32, %arg1: i32, %arg2: memref<2x4x256xf32, #tpu.memory_space<vmem>>, %arg3: memref<8x4xf32, #tpu.memory_space<vmem>>, %arg4: memref<8x1xf32, #tpu.memory_space<vmem>>, %arg5: memref<2x8x256xf32, #tpu.memory_space<vmem>>) attributes {dimension_semantics = [#tpu.dimension_semantics<parallel>, #tpu.dimension_semantics<parallel>], iteration_bounds = array<i64: 1, 1>, scalar_prefetch = 0 : i64, scratch_operands = 0 : i64, tpu.core_type = #tpu.core_type<tc>, window_params = [{transform_indices = @transform_0, window_bounds = array<i64: 2, 4, 256>}, {pipeline_mode = #tpu.pipeline_mode<synchronous>, transform_indices = @transform_1, window_bounds = array<i64: 8, 4>}, {pipeline_mode = #tpu.pipeline_mode<synchronous>, transform_indices = @transform_2, window_bounds = array<i64: 8, 1>}, {transform_indices = @transform_3, window_bounds = array<i64: 2, 8, 256>}]} {
    %c0 = arith.constant 0 : index
    %c0_0 = arith.constant 0 : index
    %0 = vector.load %arg3[%c0, %c0_0] : memref<8x4xf32, #tpu.memory_space<vmem>>, vector<8x4xf32>
    %c0_1 = arith.constant 0 : index
    %c0_2 = arith.constant 0 : index
    %1 = vector.load %arg4[%c0_1, %c0_2] : memref<8x1xf32, #tpu.memory_space<vmem>>, vector<8x1xf32>
    %c0_3 = arith.constant 0 : index
    %c0_4 = arith.constant 0 : index
    %c0_5 = arith.constant 0 : index
    %2 = vector.load %arg2[%c0_3, %c0_4, %c0_5] : memref<2x4x256xf32, #tpu.memory_space<vmem>>, vector<1x4x256xf32>
    %3 = vector.shape_cast %2 : vector<1x4x256xf32> to vector<4x256xf32>
    %cst = arith.constant dense<0.000000e+00> : vector<8x256xf32>
    %4 = tpu.matmul %0, %3, %cst {dimension_numbers = #tpu.dot_dimension_numbers<[1], [0], [0], [1], [0, 0, 1, 1], [], []>} : vector<8x4xf32>, vector<4x256xf32>, vector<8x256xf32> -> vector<8x256xf32>
    %5 = vector.broadcast %1 : vector<8x1xf32> to vector<8x256xf32>
    %6 = arith.addf %4, %5 : vector<8x256xf32>
    %cst_6 = arith.constant 0.000000e+00 : f32
    %7 = vector.broadcast %cst_6 : f32 to vector<8x256xf32>
    %8 = arith.maximumf %6, %7 : vector<8x256xf32>
    %c0_7 = arith.constant 0 : index
    %c0_8 = arith.constant 0 : index
    %c0_9 = arith.constant 0 : index
    %9 = vector.load %arg5[%c0_7, %c0_8, %c0_9] : memref<2x8x256xf32, #tpu.memory_space<vmem>>, vector<1x8x256xf32>
    %10 = vector.shape_cast %9 : vector<1x8x256xf32> to vector<8x256xf32>
    %11 = vector.shape_cast %8 : vector<8x256xf32> to vector<1x8x256xf32>
    tpu.vector_store %arg5[%c0_7, %c0_8, %c0_9], %11 {strides = array<i32>} : memref<2x8x256xf32, #tpu.memory_space<vmem>>, vector<1x8x256xf32>,
    %c1 = arith.constant 1 : index
    %c0_10 = arith.constant 0 : index
    %c0_11 = arith.constant 0 : index
    %12 = vector.load %arg2[%c1, %c0_10, %c0_11] : memref<2x4x256xf32, #tpu.memory_space<vmem>>, vector<1x4x256xf32>
    %13 = vector.shape_cast %12 : vector<1x4x256xf32> to vector<4x256xf32>
    %cst_12 = arith.constant dense<0.000000e+00> : vector<8x256xf32>
    %14 = tpu.matmul %0, %13, %cst_12 {dimension_numbers = #tpu.dot_dimension_numbers<[1], [0], [0], [1], [0, 0, 1, 1], [], []>} : vector<8x4xf32>, vector<4x256xf32>, vector<8x256xf32> -> vector<8x256xf32>
    %15 = vector.broadcast %1 : vector<8x1xf32> to vector<8x256xf32>
    %16 = arith.addf %14, %15 : vector<8x256xf32>
    %cst_13 = arith.constant 0.000000e+00 : f32
    %17 = vector.broadcast %cst_13 : f32 to vector<8x256xf32>
    %18 = arith.maximumf %16, %17 : vector<8x256xf32>
    %c1_14 = arith.constant 1 : index
    %c0_15 = arith.constant 0 : index
    %c0_16 = arith.constant 0 : index
    %19 = vector.load %arg5[%c1_14, %c0_15, %c0_16] : memref<2x8x256xf32, #tpu.memory_space<vmem>>, vector<1x8x256xf32>
    %20 = vector.shape_cast %19 : vector<1x8x256xf32> to vector<8x256xf32>
    %21 = vector.shape_cast %18 : vector<8x256xf32> to vector<1x8x256xf32>
    tpu.vector_store %arg5[%c1_14, %c0_15, %c0_16], %21 {strides = array<i32>} : memref<2x8x256xf32, #tpu.memory_space<vmem>>, vector<1x8x256xf32>,
    return
  }
  func.func @transform_0(%arg0: i32, %arg1: i32) -> (i32, i32, i32) {
    %c0_i32 = arith.constant 0 : i32
    %c0_i32_0 = arith.constant 0 : i32
    return %arg0, %c0_i32, %arg1 : i32, i32, i32
  }
  func.func @transform_1(%arg0: i32, %arg1: i32) -> (i32, i32) {
    %c0_i32 = arith.constant 0 : i32
    %c0_i32_0 = arith.constant 0 : i32
    %c0_i32_1 = arith.constant 0 : i32
    return %c0_i32, %c0_i32_0 : i32, i32
  }
  func.func @transform_2(%arg0: i32, %arg1: i32) -> (i32, i32) {
    %c0_i32 = arith.constant 0 : i32
    %c0_i32_0 = arith.constant 0 : i32
    %c0_i32_1 = arith.constant 0 : i32
    return %c0_i32, %c0_i32_0 : i32, i32
  }
  func.func @transform_3(%arg0: i32, %arg1: i32) -> (i32, i32, i32) {
    %c0_i32 = arith.constant 0 : i32
    %c0_i32_0 = arith.constant 0 : i32
    return %arg0, %c0_i32, %arg1 : i32, i32, i32
  }
}

module attributes {stable_mosaic.version = 11 : i64} {
  func.func @_conv1x1_bn_relu_kernel(%arg0: i32, %arg1: i32, %arg2: memref<2x4x256xf32, #tpu.memory_space<vmem>>, %arg3: memref<8x4xf32, #tpu.memory_space<vmem>>, %arg4: memref<8x1xf32, #tpu.memory_space<vmem>>, %arg5: memref<2x8x256xf32, #tpu.memory_space<vmem>>) attributes {dimension_semantics = [#tpu.dimension_semantics<parallel>, #tpu.dimension_semantics<parallel>], iteration_bounds = array<i64: 1, 1>, scalar_prefetch = 0 : i64, scratch_operands = 0 : i64, tpu.core_type = #tpu.core_type<tc>, window_params = [{transform_indices = @transform_0, window_bounds = array<i64: 2, 4, 256>}, {pipeline_mode = #tpu.pipeline_mode<synchronous>, transform_indices = @transform_1, window_bounds = array<i64: 8, 4>}, {pipeline_mode = #tpu.pipeline_mode<synchronous>, transform_indices = @transform_2, window_bounds = array<i64: 8, 1>}, {transform_indices = @transform_3, window_bounds = array<i64: 2, 8, 256>}]} {
    %c0 = arith.constant 0 : index
    %c0_0 = arith.constant 0 : index
    %0 = vector.load %arg3[%c0, %c0_0] : memref<8x4xf32, #tpu.memory_space<vmem>>, vector<8x4xf32>
    %c0_1 = arith.constant 0 : index
    %c0_2 = arith.constant 0 : index
    %1 = vector.load %arg4[%c0_1, %c0_2] : memref<8x1xf32, #tpu.memory_space<vmem>>, vector<8x1xf32>
    %c0_3 = arith.constant 0 : index
    %c0_4 = arith.constant 0 : index
    %c0_5 = arith.constant 0 : index
    %2 = vector.load %arg2[%c0_3, %c0_4, %c0_5] : memref<2x4x256xf32, #tpu.memory_space<vmem>>, vector<1x4x256xf32>
    %3 = vector.shape_cast %2 : vector<1x4x256xf32> to vector<4x256xf32>
    %cst = arith.constant dense<0.000000e+00> : vector<8x256xf32>
    %4 = tpu.matmul %0, %3, %cst {dimension_numbers = #tpu.dot_dimension_numbers<[1], [0], [0], [1], [0, 0, 1, 1], [], []>} : vector<8x4xf32>, vector<4x256xf32>, vector<8x256xf32> -> vector<8x256xf32>
    %5 = vector.broadcast %1 : vector<8x1xf32> to vector<8x256xf32>
    %6 = arith.addf %4, %5 : vector<8x256xf32>
    %cst_6 = arith.constant 0.000000e+00 : f32
    %7 = vector.broadcast %cst_6 : f32 to vector<8x256xf32>
    %8 = arith.maximumf %6, %7 : vector<8x256xf32>
    %c0_7 = arith.constant 0 : index
    %c0_8 = arith.constant 0 : index
    %c0_9 = arith.constant 0 : index
    %9 = vector.load %arg5[%c0_7, %c0_8, %c0_9] : memref<2x8x256xf32, #tpu.memory_space<vmem>>, vector<1x8x256xf32>
    %10 = vector.shape_cast %9 : vector<1x8x256xf32> to vector<8x256xf32>
    %11 = vector.shape_cast %8 : vector<8x256xf32> to vector<1x8x256xf32>
    tpu.vector_store %arg5[%c0_7, %c0_8, %c0_9], %11 {strides = array<i32>} : memref<2x8x256xf32, #tpu.memory_space<vmem>>, vector<1x8x256xf32>,
    %c1 = arith.constant 1 : index
    %c0_10 = arith.constant 0 : index
    %c0_11 = arith.constant 0 : index
    %12 = vector.load %arg2[%c1, %c0_10, %c0_11] : memref<2x4x256xf32, #tpu.memory_space<vmem>>, vector<1x4x256xf32>
    %13 = vector.shape_cast %12 : vector<1x4x256xf32> to vector<4x256xf32>
    %cst_12 = arith.constant dense<0.000000e+00> : vector<8x256xf32>
    %14 = tpu.matmul %0, %13, %cst_12 {dimension_numbers = #tpu.dot_dimension_numbers<[1], [0], [0], [1], [0, 0, 1, 1], [], []>} : vector<8x4xf32>, vector<4x256xf32>, vector<8x256xf32> -> vector<8x256xf32>
    %15 = vector.broadcast %1 : vector<8x1xf32> to vector<8x256xf32>
    %16 = arith.addf %14, %15 : vector<8x256xf32>
    %cst_13 = arith.constant 0.000000e+00 : f32
    %17 = vector.broadcast %cst_13 : f32 to vector<8x256xf32>
    %18 = arith.maximumf %16, %17 : vector<8x256xf32>
    %c1_14 = arith.constant 1 : index
    %c0_15 = arith.constant 0 : index
    %c0_16 = arith.constant 0 : index
    %19 = vector.load %arg5[%c1_14, %c0_15, %c0_16] : memref<2x8x256xf32, #tpu.memory_space<vmem>>, vector<1x8x256xf32>
    %20 = vector.shape_cast %19 : vector<1x8x256xf32> to vector<8x256xf32>
    %21 = vector.shape_cast %18 : vector<8x256xf32> to vector<1x8x256xf32>
    tpu.vector_store %arg5[%c1_14, %c0_15, %c0_16], %21 {strides = array<i32>} : memref<2x8x256xf32, #tpu.memory_space<vmem>>, vector<1x8x256xf32>,
    return
  }
  func.func @transform_0(%arg0: i32, %arg1: i32) -> (i32, i32, i32) {
    %c0_i32 = arith.constant 0 : i32
    %c0_i32_0 = arith.constant 0 : i32
    return %arg0, %c0_i32, %arg1 : i32, i32, i32
  }
  func.func @transform_1(%arg0: i32, %arg1: i32) -> (i32, i32) {
    %c0_i32 = arith.constant 0 : i32
    %c0_i32_0 = arith.constant 0 : i32
    %c0_i32_1 = arith.constant 0 : i32
    return %c0_i32, %c0_i32_0 : i32, i32
  }
  func.func @transform_2(%arg0: i32, %arg1: i32) -> (i32, i32) {
    %c0_i32 = arith.constant 0 : i32
    %c0_i32_0 = arith.constant 0 : i32
    %c0_i32_1 = arith.constant 0 : i32
    return %c0_i32, %c0_i32_0 : i32, i32
  }
  func.func @transform_3(%arg0: i32, %arg1: i32) -> (i32, i32, i32) {
    %c0_i32 = arith.constant 0 : i32
    %c0_i32_0 = arith.constant 0 : i32
    return %arg0, %c0_i32, %arg1 : i32, i32, i32
  }
}

</mosaic_0001>

<llo_original>
// kernel: tpu_custom_call.1
$region0: #{tpu_custom_call.1}
  #allocation0 [shape = 'u32[]', space=smem, size = 0x4, offset = 0x4, fixed_abs, tag = 'smem constant byte address 0x4 - core index']
  #allocation1 [shape = 'u32[144,128]{1,0:T(1,128)}', space=vmem, size = 0x12000, scoped, tag = 'internal scratch']
  %s0 = inlined_call_operand.vmem [shape: f32[2,4,256], index: 0, kind: input, shape index: {}]
  %s1 = inlined_call_operand.vmem [shape: f32[8,4], index: 1, kind: input, shape index: {}]
  %s2 = inlined_call_operand.vmem [shape: f32[8,1], index: 2, kind: input, shape index: {}]
  %s3 = inlined_call_operand.hbm [shape: f32[2,8,256], index: 3, kind: output, shape index: {}]
  %s4 = sld [smem:[#allocation0]]
  $region22: #{tpu_custom_call.1} parent=0
    _
  %s6 = ssub.s32 1, %s4
  %s7 = scalar_select 0, %s6, %s4
  $region1: #{tpu_custom_call.1} parent=0
    #allocation2 [shape = 'u8[16384]{0}', space=vmem, size = 0x4000, scoped, tag = 'output window, operand 0, single buffered']
    #allocation3 [shape = 's32[1]{0}', space=sflag, size = 0x4, scoped, tag = 'scoped memory for tpu_custom_call.1']
    %8 = vsyncpa [#allocation3], 0
    // Predicated region
    $region2: #{tpu_custom_call.1} parent=1 // pred_check
      _
    $region3: #{tpu_custom_call.1} parent=1 // pred_check_branch
      %10 = sbr.rel (0) target = $region5
    $region4: #{tpu_custom_call.1} parent=1 // pred_region
      _
    $region5: #{tpu_custom_call.1} parent=1 // pred_fallthru
      _
    // Predicated region
    $region6: #{tpu_custom_call.1} parent=1 // pred_check
      _
    $region7: #{tpu_custom_call.1} parent=1 // pred_check_branch
      %12 = sbr.rel (0) target = $region9
    $region8: #{tpu_custom_call.1} parent=1 // pred_region
      _
    $region9: #{tpu_custom_call.1} parent=1 // pred_fallthru
      _
    // Predicated region
    $region10: #{tpu_custom_call.1} parent=1 // pred_check
      _
    $region11: #{tpu_custom_call.1} parent=1 // pred_check_branch
      %14 = sbr.rel (0) target = $region13
    $region12: #{tpu_custom_call.1} parent=1 // pred_region
      _
    $region13: #{tpu_custom_call.1} parent=1 // pred_fallthru
      _
    %v15 = vld [vmem:[%s1] sm:$0xff]
    %v16 = vld [vmem:[%s2] sm:$0xff]
    %v17 = vld [vmem:[%s0] sm:$0xff]
    %19 = vset.pattern.permute.xlu0 0
    %20 = vperm.xlu0 %19, %v16
    %v21 = vpop.permute.xlu0 %20
    %v24 = vcombine.high %v17, %v17
    %vm25 = vcmask 31744
    %v27 = vsel %vm25, %v15, 0
    %vm29 = vcmask 1043456
    %v30 = vsel %vm29, %v17, 0
    %v32 = vsel %vm29, %v24, 0
    %34 = vmatprep.subr.mxu0 %v32
    %35 = vmatpush1.msra.mxu0 %v30
    %36 = vmatprep.subr.mxu0 0.0
    %37 = vmatpush1.msra.mxu0 0.0
    %38 = vmatprep.subr.mxu0 0.0
    %39 = vmatpush1.msra.mxu0 0.0
    %40 = vmatprep.subr.mxu0 0.0
    %41 = vmatpush1.msra.mxu0 0.0
    %42 = vmatprep.subr.mxu0 0.0
    %43 = vmatpush1.msra.mxu0 0.0
    %44 = vmatprep.subr.mxu0 0.0
    %45 = vmatpush1.msra.mxu0 0.0
    %46 = vmatprep.subr.mxu0 0.0
    %47 = vmatpush1.msra.mxu0 0.0
    %48 = vmatprep.subr.mxu0 0.0
    %49 = vmatpush1.msra.mxu0 0.0
    %50 = vmatprep.subr.mxu0 0.0
    %51 = vmatpush1.msra.mxu0 0.0
    %52 = vmatprep.subr.mxu0 0.0
    %53 = vmatpush1.msra.mxu0 0.0
    %54 = vmatprep.subr.mxu0 0.0
    %55 = vmatpush1.msra.mxu0 0.0
    %56 = vmatprep.subr.mxu0 0.0
    %57 = vmatpush1.msra.mxu0 0.0
    %58 = vmatprep.subr.mxu0 0.0
    %59 = vmatpush1.msra.mxu0 0.0
    %60 = vmatprep.subr.mxu0 0.0
    %61 = vmatpush1.msra.mxu0 0.0
    %62 = vmatprep.subr.mxu0 0.0
    %63 = vmatpush1.msra.mxu0 0.0
    %64 = vmatprep.subr.mxu0 0.0
    %65 = vmatpush1.msra.mxu0 0.0
    %66 = vmatprep.subr.mxu0 0.0
    %67 = vmatpush1.msra.mxu0 0.0
    %68 = vmatprep.subr.mxu0 0.0
    %69 = vmatpush1.msra.mxu0 0.0
    %70 = vmatprep.subr.mxu0 0.0
    %71 = vmatpush1.msra.mxu0 0.0
    %72 = vmatprep.subr.mxu0 0.0
    %73 = vmatpush1.msra.mxu0 0.0
    %74 = vmatprep.subr.mxu0 0.0
    %75 = vmatpush1.msra.mxu0 0.0
    %76 = vmatprep.subr.mxu0 0.0
    %77 = vmatpush1.msra.mxu0 0.0
    %78 = vmatprep.subr.mxu0 0.0
    %79 = vmatpush1.msra.mxu0 0.0
    %80 = vmatprep.subr.mxu0 0.0
    %81 = vmatpush1.msra.mxu0 0.0
    %82 = vmatprep.subr.mxu0 0.0
    %83 = vmatpush1.msra.mxu0 0.0
    %84 = vmatprep.subr.mxu0 0.0
    %85 = vmatpush1.msra.mxu0 0.0
    %86 = vmatprep.subr.mxu0 0.0
    %87 = vmatpush1.msra.mxu0 0.0
    %88 = vmatprep.subr.mxu0 0.0
    %89 = vmatpush1.msra.mxu0 0.0
    %90 = vmatprep.subr.mxu0 0.0
    %91 = vmatpush1.msra.mxu0 0.0
    %92 = vmatprep.subr.mxu0 0.0
    %93 = vmatpush1.msra.mxu0 0.0
    %94 = vmatprep.subr.mxu0 0.0
    %95 = vmatpush1.msra.mxu0 0.0
    %96 = vmatprep.subr.mxu0 0.0
    %97 = vmatpush1.msra.mxu0 0.0
    %98 = vmatprep.mubr.f32.mxu0 0.0
    %99 = vmatmul.mubr.f32.gmra.mrb[0].mxu0 %v27
    %v100 = vpop.f32.mrb[0].mxu0
    %v101 = vadd.f32 %v21, %v100
    %v102 = vpop.f32.mrb[0].mxu0
    %v103 = vadd.f32 %v21, %v102
    %104 = vdwg.mxu0
    %v105 = vmax.f32 %v101, 0.0
    %v106 = vmax.f32 %v103, 0.0
    %107 = vst [vmem:[#allocation2] sm:$0xff] %v105
    %108 = vst [vmem:[#allocation2 + $0x8] sm:$0xff] %v106
    %s109 = scalar_lea.vmem %s0, 8
    %v110 = vld [vmem:[%s109] sm:$0xff]
    %v112 = vcombine.high %v110, %v110
    %v113 = vsel %vm29, %v110, 0
    %v115 = vsel %vm29, %v112, 0
    %117 = vmatprep.subr.mxu0 %v115
    %118 = vmatpush1.msra.mxu0 %v113
    %119 = vmatprep.subr.mxu0 0.0
    %120 = vmatpush1.msra.mxu0 0.0
    %121 = vmatprep.subr.mxu0 0.0
    %122 = vmatpush1.msra.mxu0 0.0
    %123 = vmatprep.subr.mxu0 0.0
    %124 = vmatpush1.msra.mxu0 0.0
    %125 = vmatprep.subr.mxu0 0.0
    %126 = vmatpush1.msra.mxu0 0.0
    %127 = vmatprep.subr.mxu0 0.0
    %128 = vmatpush1.msra.mxu0 0.0
    %129 = vmatprep.subr.mxu0 0.0
    %130 = vmatpush1.msra.mxu0 0.0
    %131 = vmatprep.subr.mxu0 0.0
    %132 = vmatpush1.msra.mxu0 0.0
    %133 = vmatprep.subr.mxu0 0.0
    %134 = vmatpush1.msra.mxu0 0.0
    %135 = vmatprep.subr.mxu0 0.0
    %136 = vmatpush1.msra.mxu0 0.0
    %137 = vmatprep.subr.mxu0 0.0
    %138 = vmatpush1.msra.mxu0 0.0
    %139 = vmatprep.subr.mxu0 0.0
    %140 = vmatpush1.msra.mxu0 0.0
    %141 = vmatprep.subr.mxu0 0.0
    %142 = vmatpush1.msra.mxu0 0.0
    %143 = vmatprep.subr.mxu0 0.0
    %144 = vmatpush1.msra.mxu0 0.0
    %145 = vmatprep.subr.mxu0 0.0
    %146 = vmatpush1.msra.mxu0 0.0
    %147 = vmatprep.subr.mxu0 0.0
    %148 = vmatpush1.msra.mxu0 0.0
    %149 = vmatprep.subr.mxu0 0.0
    %150 = vmatpush1.msra.mxu0 0.0
    %151 = vmatprep.subr.mxu0 0.0
    %152 = vmatpush1.msra.mxu0 0.0
    %153 = vmatprep.subr.mxu0 0.0
    %154 = vmatpush1.msra.mxu0 0.0
    %155 = vmatprep.subr.mxu0 0.0
    %156 = vmatpush1.msra.mxu0 0.0
    %157 = vmatprep.subr.mxu0 0.0
    %158 = vmatpush1.msra.mxu0 0.0
    %159 = vmatprep.subr.mxu0 0.0
    %160 = vmatpush1.msra.mxu0 0.0
    %161 = vmatprep.subr.mxu0 0.0
    %162 = vmatpush1.msra.mxu0 0.0
    %163 = vmatprep.subr.mxu0 0.0
    %164 = vmatpush1.msra.mxu0 0.0
    %165 = vmatprep.subr.mxu0 0.0
    %166 = vmatpush1.msra.mxu0 0.0
    %167 = vmatprep.subr.mxu0 0.0
    %168 = vmatpush1.msra.mxu0 0.0
    %169 = vmatprep.subr.mxu0 0.0
    %170 = vmatpush1.msra.mxu0 0.0
    %171 = vmatprep.subr.mxu0 0.0
    %172 = vmatpush1.msra.mxu0 0.0
    %173 = vmatprep.subr.mxu0 0.0
    %174 = vmatpush1.msra.mxu0 0.0
    %175 = vmatprep.subr.mxu0 0.0
    %176 = vmatpush1.msra.mxu0 0.0
    %177 = vmatprep.subr.mxu0 0.0
    %178 = vmatpush1.msra.mxu0 0.0
    %179 = vmatprep.subr.mxu0 0.0
    %180 = vmatpush1.msra.mxu0 0.0
    %181 = vmatprep.mubr.f32.mxu0 0.0
    %182 = vmatmul.mubr.f32.gmra.mrb[0].mxu0 %v27
    %v183 = vpop.f32.mrb[0].mxu0
    %v184 = vadd.f32 %v21, %v183
    %v185 = vpop.f32.mrb[0].mxu0
    %v186 = vadd.f32 %v21, %v185
    %187 = vdwg.mxu0
    %v188 = vmax.f32 %v184, 0.0
    %v189 = vmax.f32 %v186, 0.0
    %s190 = scalar_lea.vmem [#allocation2], 16
    %191 = vst [vmem:[%s190] sm:$0xff] %v188
    %192 = vst [vmem:[%s190 + $0x8] sm:$0xff] %v189
    // Predicated region
    $region14: #{tpu_custom_call.1} parent=1 // pred_check
      _
    $region15: #{tpu_custom_call.1} parent=1 // pred_check_branch
      %194 = sbr.rel (0) target = $region17
    $region16: #{tpu_custom_call.1} parent=1 // pred_region
      %s196 = ssub.s32 512, 512
      %197 = vsyncadd [#allocation3], %s196
      %s198 = sshll.u32 [#allocation2], 4
      %s199 = int_to_ptr.vmem [resolvable:$true] %s198
      %204 = dma.vmem_to_hbm [thread:$0]  %s199, 512, %s3, [#allocation3], 256, 256, 16
    $region17: #{tpu_custom_call.1} parent=1 // pred_fallthru
      _
    // Predicated region
    $region18: #{tpu_custom_call.1} parent=1 // pred_check
      _
    $region19: #{tpu_custom_call.1} parent=1 // pred_check_branch
      %206 = sbr.rel (0) target = $region21
    $region20: #{tpu_custom_call.1} parent=1 // pred_region
      %207 = dma.done [#allocation3], 512
    $region21: #{tpu_custom_call.1} parent=1 // pred_fallthru
      _
    %208 = vsyncpa [#allocation3], 1

// kernel: tpu_custom_call.1
$region0: #{tpu_custom_call.1}
  #allocation0 [shape = 'u32[]', space=smem, size = 0x4, offset = 0x4, fixed_abs, tag = 'smem constant byte address 0x4 - core index']
  #allocation1 [shape = 'u32[144,128]{1,0:T(1,128)}', space=vmem, size = 0x12000, scoped, tag = 'internal scratch']
  %s0 = inlined_call_operand.vmem [shape: f32[2,4,256], index: 0, kind: input, shape index: {}]
  %s1 = inlined_call_operand.vmem [shape: f32[8,4], index: 1, kind: input, shape index: {}]
  %s2 = inlined_call_operand.vmem [shape: f32[8,1], index: 2, kind: input, shape index: {}]
  %s3 = inlined_call_operand.hbm [shape: f32[2,8,256], index: 3, kind: output, shape index: {}]
  %s4 = sld [smem:[#allocation0]]
  $region22: #{tpu_custom_call.1} parent=0
    _
  %s6 = ssub.s32 1, %s4
  %s7 = scalar_select 0, %s6, %s4
  $region1: #{tpu_custom_call.1} parent=0
    #allocation2 [shape = 'u8[16384]{0}', space=vmem, size = 0x4000, scoped, tag = 'output window, operand 0, single buffered']
    #allocation3 [shape = 's32[1]{0}', space=sflag, size = 0x4, scoped, tag = 'scoped memory for tpu_custom_call.1']
    %8 = vsyncpa [#allocation3], 0
    // Predicated region
    $region2: #{tpu_custom_call.1} parent=1 // pred_check
      _
    $region3: #{tpu_custom_call.1} parent=1 // pred_check_branch
      %10 = sbr.rel (0) target = $region5
    $region4: #{tpu_custom_call.1} parent=1 // pred_region
      _
    $region5: #{tpu_custom_call.1} parent=1 // pred_fallthru
      _
    // Predicated region
    $region6: #{tpu_custom_call.1} parent=1 // pred_check
      _
    $region7: #{tpu_custom_call.1} parent=1 // pred_check_branch
      %12 = sbr.rel (0) target = $region9
    $region8: #{tpu_custom_call.1} parent=1 // pred_region
      _
    $region9: #{tpu_custom_call.1} parent=1 // pred_fallthru
      _
    // Predicated region
    $region10: #{tpu_custom_call.1} parent=1 // pred_check
      _
    $region11: #{tpu_custom_call.1} parent=1 // pred_check_branch
      %14 = sbr.rel (0) target = $region13
    $region12: #{tpu_custom_call.1} parent=1 // pred_region
      _
    $region13: #{tpu_custom_call.1} parent=1 // pred_fallthru
      _
    %v15 = vld [vmem:[%s1] sm:$0xff]
    %v16 = vld [vmem:[%s2] sm:$0xff]
    %v17 = vld [vmem:[%s0] sm:$0xff]
    %19 = vset.pattern.permute.xlu0 0
    %20 = vperm.xlu0 %19, %v16
    %v21 = vpop.permute.xlu0 %20
    %v24 = vcombine.high %v17, %v17
    %vm25 = vcmask 31744
    %v27 = vsel %vm25, %v15, 0
    %vm29 = vcmask 1043456
    %v30 = vsel %vm29, %v17, 0
    %v32 = vsel %vm29, %v24, 0
    %34 = vmatprep.subr.mxu0 %v32
    %35 = vmatpush1.msra.mxu0 %v30
    %36 = vmatprep.subr.mxu0 0.0
    %37 = vmatpush1.msra.mxu0 0.0
    %38 = vmatprep.subr.mxu0 0.0
    %39 = vmatpush1.msra.mxu0 0.0
    %40 = vmatprep.subr.mxu0 0.0
    %41 = vmatpush1.msra.mxu0 0.0
    %42 = vmatprep.subr.mxu0 0.0
    %43 = vmatpush1.msra.mxu0 0.0
    %44 = vmatprep.subr.mxu0 0.0
    %45 = vmatpush1.msra.mxu0 0.0
    %46 = vmatprep.subr.mxu0 0.0
    %47 = vmatpush1.msra.mxu0 0.0
    %48 = vmatprep.subr.mxu0 0.0
    %49 = vmatpush1.msra.mxu0 0.0
    %50 = vmatprep.subr.mxu0 0.0
    %51 = vmatpush1.msra.mxu0 0.0
    %52 = vmatprep.subr.mxu0 0.0
    %53 = vmatpush1.msra.mxu0 0.0
    %54 = vmatprep.subr.mxu0 0.0
    %55 = vmatpush1.msra.mxu0 0.0
    %56 = vmatprep.subr.mxu0 0.0
    %57 = vmatpush1.msra.mxu0 0.0
    %58 = vmatprep.subr.mxu0 0.0
    %59 = vmatpush1.msra.mxu0 0.0
    %60 = vmatprep.subr.mxu0 0.0
    %61 = vmatpush1.msra.mxu0 0.0
    %62 = vmatprep.subr.mxu0 0.0
    %63 = vmatpush1.msra.mxu0 0.0
    %64 = vmatprep.subr.mxu0 0.0
    %65 = vmatpush1.msra.mxu0 0.0
    %66 = vmatprep.subr.mxu0 0.0
    %67 = vmatpush1.msra.mxu0 0.0
    %68 = vmatprep.subr.mxu0 0.0
    %69 = vmatpush1.msra.mxu0 0.0
    %70 = vmatprep.subr.mxu0 0.0
    %71 = vmatpush1.msra.mxu0 0.0
    %72 = vmatprep.subr.mxu0 0.0
    %73 = vmatpush1.msra.mxu0 0.0
    %74 = vmatprep.subr.mxu0 0.0
    %75 = vmatpush1.msra.mxu0 0.0
    %76 = vmatprep.subr.mxu0 0.0
    %77 = vmatpush1.msra.mxu0 0.0
    %78 = vmatprep.subr.mxu0 0.0
    %79 = vmatpush1.msra.mxu0 0.0
    %80 = vmatprep.subr.mxu0 0.0
    %81 = vmatpush1.msra.mxu0 0.0
    %82 = vmatprep.subr.mxu0 0.0
    %83 = vmatpush1.msra.mxu0 0.0
    %84 = vmatprep.subr.mxu0 0.0
    %85 = vmatpush1.msra.mxu0 0.0
    %86 = vmatprep.subr.mxu0 0.0
    %87 = vmatpush1.msra.mxu0 0.0
    %88 = vmatprep.subr.mxu0 0.0
    %89 = vmatpush1.msra.mxu0 0.0
    %90 = vmatprep.subr.mxu0 0.0
    %91 = vmatpush1.msra.mxu0 0.0
    %92 = vmatprep.subr.mxu0 0.0
    %93 = vmatpush1.msra.mxu0 0.0
    %94 = vmatprep.subr.mxu0 0.0
    %95 = vmatpush1.msra.mxu0 0.0
    %96 = vmatprep.subr.mxu0 0.0
    %97 = vmatpush1.msra.mxu0 0.0
    %98 = vmatprep.mubr.f32.mxu0 0.0
    %99 = vmatmul.mubr.f32.gmra.mrb[0].mxu0 %v27
    %v100 = vpop.f32.mrb[0].mxu0
    %v101 = vadd.f32 %v21, %v100
    %v102 = vpop.f32.mrb[0].mxu0
    %v103 = vadd.f32 %v21, %v102
    %104 = vdwg.mxu0
    %v105 = vmax.f32 %v101, 0.0
    %v106 = vmax.f32 %v103, 0.0
    %107 = vst [vmem:[#allocation2] sm:$0xff] %v105
    %108 = vst [vmem:[#allocation2 + $0x8] sm:$0xff] %v106
    %s109 = scalar_lea.vmem %s0, 8
    %v110 = vld [vmem:[%s109] sm:$0xff]
    %v112 = vcombine.high %v110, %v110
    %v113 = vsel %vm29, %v110, 0
    %v115 = vsel %vm29, %v112, 0
    %117 = vmatprep.subr.mxu0 %v115
    %118 = vmatpush1.msra.mxu0 %v113
    %119 = vmatprep.subr.mxu0 0.0
    %120 = vmatpush1.msra.mxu0 0.0
    %121 = vmatprep.subr.mxu0 0.0
    %122 = vmatpush1.msra.mxu0 0.0
    %123 = vmatprep.subr.mxu0 0.0
    %124 = vmatpush1.msra.mxu0 0.0
    %125 = vmatprep.subr.mxu0 0.0
    %126 = vmatpush1.msra.mxu0 0.0
    %127 = vmatprep.subr.mxu0 0.0
    %128 = vmatpush1.msra.mxu0 0.0
    %129 = vmatprep.subr.mxu0 0.0
    %130 = vmatpush1.msra.mxu0 0.0
    %131 = vmatprep.subr.mxu0 0.0
    %132 = vmatpush1.msra.mxu0 0.0
    %133 = vmatprep.subr.mxu0 0.0
    %134 = vmatpush1.msra.mxu0 0.0
    %135 = vmatprep.subr.mxu0 0.0
    %136 = vmatpush1.msra.mxu0 0.0
    %137 = vmatprep.subr.mxu0 0.0
    %138 = vmatpush1.msra.mxu0 0.0
    %139 = vmatprep.subr.mxu0 0.0
    %140 = vmatpush1.msra.mxu0 0.0
    %141 = vmatprep.subr.mxu0 0.0
    %142 = vmatpush1.msra.mxu0 0.0
    %143 = vmatprep.subr.mxu0 0.0
    %144 = vmatpush1.msra.mxu0 0.0
    %145 = vmatprep.subr.mxu0 0.0
    %146 = vmatpush1.msra.mxu0 0.0
    %147 = vmatprep.subr.mxu0 0.0
    %148 = vmatpush1.msra.mxu0 0.0
    %149 = vmatprep.subr.mxu0 0.0
    %150 = vmatpush1.msra.mxu0 0.0
    %151 = vmatprep.subr.mxu0 0.0
    %152 = vmatpush1.msra.mxu0 0.0
    %153 = vmatprep.subr.mxu0 0.0
    %154 = vmatpush1.msra.mxu0 0.0
    %155 = vmatprep.subr.mxu0 0.0
    %156 = vmatpush1.msra.mxu0 0.0
    %157 = vmatprep.subr.mxu0 0.0
    %158 = vmatpush1.msra.mxu0 0.0
    %159 = vmatprep.subr.mxu0 0.0
    %160 = vmatpush1.msra.mxu0 0.0
    %161 = vmatprep.subr.mxu0 0.0
    %162 = vmatpush1.msra.mxu0 0.0
    %163 = vmatprep.subr.mxu0 0.0
    %164 = vmatpush1.msra.mxu0 0.0
    %165 = vmatprep.subr.mxu0 0.0
    %166 = vmatpush1.msra.mxu0 0.0
    %167 = vmatprep.subr.mxu0 0.0
    %168 = vmatpush1.msra.mxu0 0.0
    %169 = vmatprep.subr.mxu0 0.0
    %170 = vmatpush1.msra.mxu0 0.0
    %171 = vmatprep.subr.mxu0 0.0
    %172 = vmatpush1.msra.mxu0 0.0
    %173 = vmatprep.subr.mxu0 0.0
    %174 = vmatpush1.msra.mxu0 0.0
    %175 = vmatprep.subr.mxu0 0.0
    %176 = vmatpush1.msra.mxu0 0.0
    %177 = vmatprep.subr.mxu0 0.0
    %178 = vmatpush1.msra.mxu0 0.0
    %179 = vmatprep.subr.mxu0 0.0
    %180 = vmatpush1.msra.mxu0 0.0
    %181 = vmatprep.mubr.f32.mxu0 0.0
    %182 = vmatmul.mubr.f32.gmra.mrb[0].mxu0 %v27
    %v183 = vpop.f32.mrb[0].mxu0
    %v184 = vadd.f32 %v21, %v183
    %v185 = vpop.f32.mrb[0].mxu0
    %v186 = vadd.f32 %v21, %v185
    %187 = vdwg.mxu0
    %v188 = vmax.f32 %v184, 0.0
    %v189 = vmax.f32 %v186, 0.0
    %s190 = scalar_lea.vmem [#allocation2], 16
    %191 = vst [vmem:[%s190] sm:$0xff] %v188
    %192 = vst [vmem:[%s190 + $0x8] sm:$0xff] %v189
    // Predicated region
    $region14: #{tpu_custom_call.1} parent=1 // pred_check
      _
    $region15: #{tpu_custom_call.1} parent=1 // pred_check_branch
      %194 = sbr.rel (0) target = $region17
    $region16: #{tpu_custom_call.1} parent=1 // pred_region
      %s196 = ssub.s32 512, 512
      %197 = vsyncadd [#allocation3], %s196
      %s198 = sshll.u32 [#allocation2], 4
      %s199 = int_to_ptr.vmem [resolvable:$true] %s198
      %204 = dma.vmem_to_hbm [thread:$0]  %s199, 512, %s3, [#allocation3], 256, 256, 16
    $region17: #{tpu_custom_call.1} parent=1 // pred_fallthru
      _
    // Predicated region
    $region18: #{tpu_custom_call.1} parent=1 // pred_check
      _
    $region19: #{tpu_custom_call.1} parent=1 // pred_check_branch
      %206 = sbr.rel (0) target = $region21
    $region20: #{tpu_custom_call.1} parent=1 // pred_region
      %207 = dma.done [#allocation3], 512
    $region21: #{tpu_custom_call.1} parent=1 // pred_fallthru
      _
    %208 = vsyncpa [#allocation3], 1

</llo_original>
